<compile_context>
chip_gen: v7x
topology: tpu7x:2x2x1
jax: 0.10.0
libtpu: 0.0.40
codegen_flags: <defaults>
</compile_context>

<pallas_src>
import jax
import jax.numpy as jnp
import numpy as np
from jax import lax
from jax.experimental import pallas as pl
from jax.experimental.pallas import tpu as pltpu


def _round_up(x, m):
    return ((x + m - 1) // m) * m


def _stats_kernel(p_ref, w_ref, sum_ref, ssq_ref):
    """Per M-tile: conv-as-matmul (no bias) + per-tile channel sum / sum-of-squares.

    Partials are written as (8, Cout) slabs (sublane-split, VPU-only adds) and
    reduced to a single (Cout,) vector by tiny XLA glue outside the kernel, which
    keeps the grid axis fully 'parallel' (no resident accumulator)."""
    y = jnp.dot(p_ref[...], w_ref[...], preferred_element_type=jnp.float32)
    tm, c = y.shape
    y3 = y.reshape(tm // 8, 8, c)                  # split sublane blocks, minor dim intact
    sum_ref[0] = jnp.sum(y3, axis=0)               # (8, Cout)
    ssq_ref[0] = jnp.sum(y3 * y3, axis=0)          # (8, Cout)


def _conv_bn_kernel(p_ref, w_ref, a_ref, c_ref, o_ref):
    """Per M-tile: conv-as-matmul fused with BatchNorm apply: out = y * A + C.

    Epilogue arithmetic stays in f32 (v5e VPU has no bf16 ALU); only the final
    store is bf16."""
    y = jnp.dot(p_ref[...], w_ref[...], preferred_element_type=jnp.float32)
    o_ref[...] = (y * a_ref[...] + c_ref[...]).astype(o_ref.dtype)


def ms_downsampling_forward(x, params, *, stride=2, padding=1, tm=1024, eps=1e-5):
    """x: (T, B, Cin, H, W) float32 -> (T, B, Cout, Ho, Wo) float32."""
    w = params["conv_w"]          # (Cout, Cin, kh, kw)  -- PyTorch OIHW
    gamma = params["bn_gamma"]    # (Cout,)
    beta = params["bn_beta"]      # (Cout,)
    # NOTE: params["conv_b"] is intentionally unused: under training-mode
    # BatchNorm the conv bias shifts the per-channel mean and cancels exactly.

    T, B, Cin, H, W = x.shape
    Cout, _, kh, kw = w.shape
    N = T * B
    Ho = (H + 2 * padding - kh) // stride + 1
    Wo = (W + 2 * padding - kw) // stride + 1
    K = kh * kw * Cin                      # small (18..27): kept UNPADDED
    M = N * Ho * Wo

    # Tile size: big tiles for large M; for small M shrink so the 'parallel' grid
    # axis has >= 2 steps (v7x has 2 TensorCores that only share work across steps).
    tm = min(tm, max(8, _round_up(-(-M // 2), 8)))
    M_pad = _round_up(M, tm)
    n_tiles = M_pad // tm

    # ---- glue: NCHW -> padded NHWC -> im2col patch matrix (bf16, M zero-padded) ----
    xf = x.reshape(N, Cin, H, W).transpose(0, 2, 3, 1)
    xp = jnp.pad(xf, ((0, 0), (padding, padding), (padding, padding), (0, 0)))
    cols = []
    for ih in range(kh):
        for iw in range(kw):
            cols.append(xp[:, ih:ih + stride * Ho:stride,
                           iw:iw + stride * Wo:stride, :])
    patches = jnp.stack(cols, axis=3).reshape(M, K)            # (M, K), K = (ih, iw, cin)
    patches = jnp.pad(patches, ((0, M_pad - M), (0, 0))).astype(jnp.bfloat16)

    # weight: OIHW -> (kh, kw, Cin, Cout) -> (K, Cout) bf16  (no channel padding)
    w_mat = w.transpose(2, 3, 1, 0).reshape(K, Cout).astype(jnp.bfloat16)

    cparams = pltpu.CompilerParams(
        dimension_semantics=("parallel",),
        vmem_limit_bytes=32 * 1024 * 1024,   # modest; fits v7x's 64 MiB physical VMEM
    )

    # ---- Pallas pass 1: matmul + per-tile BN batch statistics ----
    sums, ssqs = pl.pallas_call(
        _stats_kernel,
        out_shape=(jax.ShapeDtypeStruct((n_tiles, 8, Cout), jnp.float32),
                   jax.ShapeDtypeStruct((n_tiles, 8, Cout), jnp.float32)),
        grid_spec=pltpu.PrefetchScalarGridSpec(
            num_scalar_prefetch=0,
            grid=(n_tiles,),
            in_specs=[pl.BlockSpec((tm, K), lambda i: (i, 0)),
                      pl.BlockSpec((K, Cout), lambda i: (0, 0))],
            out_specs=[pl.BlockSpec((1, 8, Cout), lambda i: (i, 0, 0)),
                       pl.BlockSpec((1, 8, Cout), lambda i: (i, 0, 0))]),
        compiler_params=cparams,
    )(patches, w_mat)

    # ---- glue: per-channel BN coefficients (training mode, biased variance) ----
    # Zero-padded rows contribute exactly zero to the sums -> divide by the true M.
    csum = jnp.sum(sums, axis=(0, 1))              # (Cout,)
    cssq = jnp.sum(ssqs, axis=(0, 1))              # (Cout,)
    mean = csum / M
    var = jnp.maximum(cssq / M - mean * mean, 0.0)  # clamp: rounding can push it < 0
    a_vec = gamma / jnp.sqrt(var + eps)
    a_row = a_vec.reshape(1, Cout).astype(jnp.float32)
    c_row = (beta - mean * a_vec).reshape(1, Cout).astype(jnp.float32)

    # ---- Pallas pass 2: matmul fused with BatchNorm apply, unpadded bf16 output ----
    out = pl.pallas_call(
        _conv_bn_kernel,
        out_shape=jax.ShapeDtypeStruct((M_pad, Cout), jnp.bfloat16),
        grid_spec=pltpu.PrefetchScalarGridSpec(
            num_scalar_prefetch=0,
            grid=(n_tiles,),
            in_specs=[pl.BlockSpec((tm, K), lambda i: (i, 0)),
                      pl.BlockSpec((K, Cout), lambda i: (0, 0)),
                      pl.BlockSpec((1, Cout), lambda i: (0, 0)),
                      pl.BlockSpec((1, Cout), lambda i: (0, 0))],
            out_specs=pl.BlockSpec((tm, Cout), lambda i: (i, 0))),
        compiler_params=cparams,
    )(patches, w_mat, a_row, c_row)

    # ---- glue: back to (T, B, Cout, Ho, Wo) float32 ----
    out = out[:M].astype(jnp.float32).reshape(N, Ho, Wo, Cout).transpose(0, 3, 1, 2)
    return out.reshape(T, B, Cout, Ho, Wo)


def _reference(x, params, *, stride=2, padding=1, eps=1e-5):
    """Pure-JAX reference matching PyTorch Conv2d + BatchNorm2d (training mode)."""
    T, B, Cin, H, W = x.shape
    xn = x.reshape(T * B, Cin, H, W)
    y = lax.conv_general_dilated(
        xn, params["conv_w"], (stride, stride),
        ((padding, padding), (padding, padding)),
        dimension_numbers=("NCHW", "OIHW", "NCHW"),
        precision=lax.Precision.HIGHEST,
    ) + params["conv_b"].reshape(1, -1, 1, 1)
    mean = y.mean(axis=(0, 2, 3), keepdims=True)
    var = y.var(axis=(0, 2, 3), keepdims=True)
    yn = (y - mean) / jnp.sqrt(var + eps)
    yn = yn * params["bn_gamma"].reshape(1, -1, 1, 1) + params["bn_beta"].reshape(1, -1, 1, 1)
    _, Cout, Ho, Wo = yn.shape
    return yn.reshape(T, B, Cout, Ho, Wo)


if __name__ == "__main__":
    # small shapes consistent with the module: x is (T, B, Cin, H, W)
    T, B, Cin, H, W = 2, 2, 2, 16, 16
    embed_dims, ksize = 32, 3

    key = jax.random.PRNGKey(0)
    k1, k2, k3, k4, k5 = jax.random.split(key, 5)
    params = {
        "conv_w": 0.2 * jax.random.normal(k1, (embed_dims, Cin, ksize, ksize), jnp.float32),
        "conv_b": 0.1 * jax.random.normal(k2, (embed_dims,), jnp.float32),
        "bn_gamma": 1.0 + 0.1 * jax.random.normal(k3, (embed_dims,), jnp.float32),
        "bn_beta": 0.1 * jax.random.normal(k4, (embed_dims,), jnp.float32),
    }
    x = jax.random.normal(k5, (T, B, Cin, H, W), jnp.float32)

    out = ms_downsampling_forward(x, params)
    out = jax.block_until_ready(out)

    assert out.shape == (T, B, embed_dims, H // 2, W // 2), out.shape
    ref = _reference(x, params)
    # bf16 operands on the MXU + bf16 output store (f32 accumulation/epilogue):
    # tolerance loosened accordingly.
    np.testing.assert_allclose(np.asarray(out), np.asarray(ref), atol=3e-2, rtol=3e-2)

    print("KERNEL_OK")
</pallas_src>

<mosaic_0001>
module attributes {stable_mosaic.version = 11 : i64} {
  func.func @_stats_kernel(%arg0: i32, %arg1: memref<128x18xbf16, #tpu.memory_space<vmem>>, %arg2: memref<18x32xbf16, #tpu.memory_space<vmem>>, %arg3: memref<1x8x32xf32, #tpu.memory_space<vmem>>, %arg4: memref<1x8x32xf32, #tpu.memory_space<vmem>>) attributes {dimension_semantics = [#tpu.dimension_semantics<parallel>], iteration_bounds = array<i64: 2>, scalar_prefetch = 0 : i64, scratch_operands = 0 : i64, tpu.core_type = #tpu.core_type<tc>, window_params = [{transform_indices = @transform_0, window_bounds = array<i64: 128, 18>}, {pipeline_mode = #tpu.pipeline_mode<synchronous>, transform_indices = @transform_1, window_bounds = array<i64: 18, 32>}, {transform_indices = @transform_2, window_bounds = array<i64: 1, 8, 32>}, {transform_indices = @transform_3, window_bounds = array<i64: 1, 8, 32>}]} {
    %c0 = arith.constant 0 : index
    %c0_0 = arith.constant 0 : index
    %0 = vector.load %arg1[%c0, %c0_0] : memref<128x18xbf16, #tpu.memory_space<vmem>>, vector<128x18xbf16>
    %c0_1 = arith.constant 0 : index
    %c0_2 = arith.constant 0 : index
    %1 = vector.load %arg2[%c0_1, %c0_2] : memref<18x32xbf16, #tpu.memory_space<vmem>>, vector<18x32xbf16>
    %cst = arith.constant dense<0.000000e+00> : vector<128x32xf32>
    %2 = tpu.matmul %0, %1, %cst {dimension_numbers = #tpu.dot_dimension_numbers<[1], [0], [0], [1], [0, 0, 1, 1], [], []>} : vector<128x18xbf16>, vector<18x32xbf16>, vector<128x32xf32> -> vector<128x32xf32>
    %3 = vector.shape_cast %2 : vector<128x32xf32> to vector<16x8x32xf32>
    %cst_3 = arith.constant dense<0.000000e+00> : vector<8x32xf32>
    %4 = vector.multi_reduction <add>, %3, %cst_3 [0] : vector<16x8x32xf32> to vector<8x32xf32>
    %c0_4 = arith.constant 0 : index
    %c0_5 = arith.constant 0 : index
    %c0_6 = arith.constant 0 : index
    %5 = vector.load %arg3[%c0_4, %c0_5, %c0_6] : memref<1x8x32xf32, #tpu.memory_space<vmem>>, vector<1x8x32xf32>
    %6 = vector.shape_cast %5 : vector<1x8x32xf32> to vector<8x32xf32>
    %7 = vector.shape_cast %4 : vector<8x32xf32> to vector<1x8x32xf32>
    tpu.vector_store %arg3[%c0_4, %c0_5, %c0_6], %7 {strides = array<i32>} : memref<1x8x32xf32, #tpu.memory_space<vmem>>, vector<1x8x32xf32>,
    %8 = arith.mulf %3, %3 : vector<16x8x32xf32>
    %cst_7 = arith.constant dense<0.000000e+00> : vector<8x32xf32>
    %9 = vector.multi_reduction <add>, %8, %cst_7 [0] : vector<16x8x32xf32> to vector<8x32xf32>
    %c0_8 = arith.constant 0 : index
    %c0_9 = arith.constant 0 : index
    %c0_10 = arith.constant 0 : index
    %10 = vector.load %arg4[%c0_8, %c0_9, %c0_10] : memref<1x8x32xf32, #tpu.memory_space<vmem>>, vector<1x8x32xf32>
    %11 = vector.shape_cast %10 : vector<1x8x32xf32> to vector<8x32xf32>
    %12 = vector.shape_cast %9 : vector<8x32xf32> to vector<1x8x32xf32>
    tpu.vector_store %arg4[%c0_8, %c0_9, %c0_10], %12 {strides = array<i32>} : memref<1x8x32xf32, #tpu.memory_space<vmem>>, vector<1x8x32xf32>,
    return
  }
  func.func @transform_0(%arg0: i32) -> (i32, i32) {
    %c0_i32 = arith.constant 0 : i32
    %c0_i32_0 = arith.constant 0 : i32
    return %arg0, %c0_i32 : i32, i32
  }
  func.func @transform_1(%arg0: i32) -> (i32, i32) {
    %c0_i32 = arith.constant 0 : i32
    %c0_i32_0 = arith.constant 0 : i32
    %c0_i32_1 = arith.constant 0 : i32
    return %c0_i32, %c0_i32_0 : i32, i32
  }
  func.func @transform_2(%arg0: i32) -> (i32, i32, i32) {
    %c0_i32 = arith.constant 0 : i32
    %c0_i32_0 = arith.constant 0 : i32
    %c0_i32_1 = arith.constant 0 : i32
    return %arg0, %c0_i32, %c0_i32_0 : i32, i32, i32
  }
  func.func @transform_3(%arg0: i32) -> (i32, i32, i32) {
    %c0_i32 = arith.constant 0 : i32
    %c0_i32_0 = arith.constant 0 : i32
    %c0_i32_1 = arith.constant 0 : i32
    return %arg0, %c0_i32, %c0_i32_0 : i32, i32, i32
  }
}

</mosaic_0001>

<llo_original>
// kernel: tpu_custom_call.1
$region0: #{tpu_custom_call.1}
  #allocation0 [shape = 'u32[]', space=smem, size = 0x4, offset = 0x4, fixed_abs, tag = 'smem constant byte address 0x4 - core index']
  #allocation1 [shape = 'u32[144,128]{1,0:T(1,128)}', space=vmem, size = 0x12000, scoped, tag = 'internal scratch']
  %s0 = inlined_call_operand.vmem [shape: bf16[256,18], index: 0, kind: input, shape index: {}]
  %s1 = inlined_call_operand.vmem [shape: bf16[18,32], index: 1, kind: input, shape index: {}]
  %s2 = inlined_call_operand.hbm [shape: f32[2,8,32], index: 2, kind: output, shape index: {0}]
  %s3 = inlined_call_operand.hbm [shape: f32[2,8,32], index: 3, kind: output, shape index: {1}]
  %4 = xla_tuple %s2, %s3
  %s5 = sld [smem:[#allocation0]]
  $region49: #{tpu_custom_call.1} parent=0
    _
  %s7 = ssub.s32 1, %s5
  %s8 = scalar_select 0, %s7, %s5
  $region1: #{tpu_custom_call.1} parent=0
    #allocation2 [shape = 'u8[8192]{0}', space=vmem, size = 0x2000, scoped, tag = 'output window, operand 0']
    #allocation3 [shape = 's32[2]{0}', space=sflag, size = 0x8, scoped, tag = 'scoped memory for tpu_custom_call.1']
    #allocation4 [shape = 'u8[8192]{0}', space=vmem, size = 0x2000, scoped, tag = 'output window, operand 1']
    #allocation5 [shape = 's32[2]{0}', space=sflag, size = 0x8, scoped, tag = 'scoped memory for tpu_custom_call.1']
    %9 = vsyncpa [#allocation3], 0
    %s10 = scalar_lea.sflag [#allocation3], 1
    %11 = vsyncpa %s10, 0
    %12 = vsyncpa [#allocation5], 0
    %s13 = scalar_lea.sflag [#allocation5], 1
    %14 = vsyncpa %s13, 0
    loop: start=0, step=1, limit=4
    $region2: #{tpu_custom_call.1} parent=1 // loop_pre_header
      _
    $region3: #{tpu_custom_call.1} parent=1 // loop_header
      %s16 = sphi 0, %s20
      %p17 = scmp.ge.s32.totalorder %s16, 4
      %s26 = sphi 0, %s28
      %s29 = sphi 0, %s26
      %s30 = sphi 0, %s29
      %s46 = sphi 0, %s30
      %s50 = sphi 0, %s50
      %s52 = sphi 0, %s50
      %s53 = sphi 0, %s52
      %s67 = sphi 0, %s53
      %s73 = sphi 0, %s75
      %s76 = sphi 0, %s73
      %s77 = sphi 0, %s76
      %s93 = sphi 0, %s77
      %s99 = sphi 0, %s101
      %s102 = sphi 0, %s99
      %s103 = sphi 0, %s102
      %s119 = sphi 0, %s103
    $region4: #{tpu_custom_call.1} parent=1 // loop_header_branch
      %19 = sbr.rel (%p17) target = $region8
    $region5: #{tpu_custom_call.1} parent=1 // loop_body
      %s21 = ssub.s32 %s16, 1
      %s22 = ssub.s32 %s16, 2
      %s23 = sadd.s32 %s16, 1
      %s24 = ssub.s32 %s16, %s23
      %p25 = scmp.eq.s32.totalorder %s24, 0
      %s27 = sadd.s32 %s26, 1
      %s28 = scalar_select %p25, %s26, %s27
      %p31 = pneg %p25
      %p32 = scmp.eq.s32.totalorder %s16, 1
      %p33 = por %p31, %p32
      %p34 = scmp.ne.s32.totalorder %s26, %s29
      %p35 = scmp.eq.s32.totalorder %s16, 0
      %p36 = por %p34, %p35
      %p37 = scmp.ne.s32.totalorder %s26, %s29
      %p38 = scmp.eq.s32.totalorder %s21, 1
      %p39 = por %p37, %p38
      %p40 = scmp.ne.s32.totalorder %s29, %s30
      %p41 = scmp.eq.s32.totalorder %s21, 0
      %p42 = por %p40, %p41
      %p43 = scmp.ne.s32.totalorder %s29, %s30
      %p44 = scmp.eq.s32.totalorder %s22, 1
      %p45 = por %p43, %p44
      %p47 = scmp.ne.s32.totalorder %s30, %s46
      %p48 = scmp.eq.s32.totalorder %s22, 0
      %p49 = por %p47, %p48
      %s51 = sadd.s32 %s50, 1
      %p54 = scmp.eq.s32.totalorder %s16, 1
      %p55 = scmp.ne.s32.totalorder %s50, %s52
      %p56 = scmp.eq.s32.totalorder %s16, 0
      %p57 = por %p55, %p56
      %p58 = scmp.ne.s32.totalorder %s50, %s52
      %p59 = scmp.eq.s32.totalorder %s21, 1
      %p60 = por %p58, %p59
      %p61 = scmp.ne.s32.totalorder %s52, %s53
      %p62 = scmp.eq.s32.totalorder %s21, 0
      %p63 = por %p61, %p62
      %p64 = scmp.ne.s32.totalorder %s52, %s53
      %p65 = scmp.eq.s32.totalorder %s22, 1
      %p66 = por %p64, %p65
      %p68 = scmp.ne.s32.totalorder %s53, %s67
      %p69 = scmp.eq.s32.totalorder %s22, 0
      %p70 = por %p68, %p69
      %s71 = ssub.s32 %s16, %s23
      %p72 = scmp.eq.s32.totalorder %s71, 0
      %s74 = sadd.s32 %s73, 1
      %s75 = scalar_select %p72, %s73, %s74
      %p78 = pneg %p72
      %p79 = scmp.eq.s32.totalorder %s16, 1
      %p80 = por %p78, %p79
      %p81 = scmp.ne.s32.totalorder %s73, %s76
      %p82 = scmp.eq.s32.totalorder %s16, 0
      %p83 = por %p81, %p82
      %p84 = scmp.ne.s32.totalorder %s73, %s76
      %p85 = scmp.eq.s32.totalorder %s21, 1
      %p86 = por %p84, %p85
      %p87 = scmp.ne.s32.totalorder %s76, %s77
      %p88 = scmp.eq.s32.totalorder %s21, 0
      %p89 = por %p87, %p88
      %p90 = scmp.ne.s32.totalorder %s76, %s77
      %p91 = scmp.eq.s32.totalorder %s22, 1
      %p92 = por %p90, %p91
      %p94 = scmp.ne.s32.totalorder %s77, %s93
      %p95 = scmp.eq.s32.totalorder %s22, 0
      %p96 = por %p94, %p95
      %s97 = ssub.s32 %s16, %s23
      %p98 = scmp.eq.s32.totalorder %s97, 0
      %s100 = sadd.s32 %s99, 1
      %s101 = scalar_select %p98, %s99, %s100
      %p104 = pneg %p98
      %p105 = scmp.eq.s32.totalorder %s16, 1
      %p106 = por %p104, %p105
      %p107 = scmp.ne.s32.totalorder %s99, %s102
      %p108 = scmp.eq.s32.totalorder %s16, 0
      %p109 = por %p107, %p108
      %p110 = scmp.ne.s32.totalorder %s99, %s102
      %p111 = scmp.eq.s32.totalorder %s21, 1
      %p112 = por %p110, %p111
      %p113 = scmp.ne.s32.totalorder %s102, %s103
      %p114 = scmp.eq.s32.totalorder %s21, 0
      %p115 = por %p113, %p114
      %p116 = scmp.ne.s32.totalorder %s102, %s103
      %p117 = scmp.eq.s32.totalorder %s22, 1
      %p118 = por %p116, %p117
      %p120 = scmp.ne.s32.totalorder %s103, %s119
      %p121 = scmp.eq.s32.totalorder %s22, 0
      %p122 = por %p120, %p121
      %p123 = scmp.le.s32.totalorder 1, %s16
      %p124 = scmp.lt.s32.totalorder %s16, 3
      %p125 = pnand %p123, %p124
      %p126 = pneg %p125
      // Predicated region
      $region9: #{tpu_custom_call.1} parent=5 // pred_check
        _
      $region10: #{tpu_custom_call.1} parent=5 // pred_check_branch
        %128 = sbr.rel (%p125) target = $region12
      $region11: #{tpu_custom_call.1} parent=5 // pred_region
        %s129 = ssub.s32 %s16, 1
        // Predicated region
        $region13: #{tpu_custom_call.1} parent=11 // pred_check
          %p130 = pneg %p63
        $region14: #{tpu_custom_call.1} parent=11 // pred_check_branch
          %132 = sbr.rel (%p130) target = $region16
        $region15: #{tpu_custom_call.1} parent=11 // pred_region
          _
        $region16: #{tpu_custom_call.1} parent=11 // pred_fallthru
          _
      $region12: #{tpu_custom_call.1} parent=5 // pred_fallthru
        _
      %p133 = scmp.lt.s32.totalorder %s16, 2
      // Predicated region
      $region17: #{tpu_custom_call.1} parent=5 // pred_check
        %p134 = pneg %p133
      $region18: #{tpu_custom_call.1} parent=5 // pred_check_branch
        %136 = sbr.rel (%p134) target = $region20
      $region19: #{tpu_custom_call.1} parent=5 // pred_region
        // Predicated region
        $region21: #{tpu_custom_call.1} parent=19 // pred_check
          %p137 = pneg %p36
        $region22: #{tpu_custom_call.1} parent=19 // pred_check_branch
          %139 = sbr.rel (%p137) target = $region24
        $region23: #{tpu_custom_call.1} parent=19 // pred_region
          %s140 = smul.u32 16, %s16
          %p141 = scmp.lt.s32.totalorder %s140, 31
          %s142 = scalar_select %p141, %s140, 31
          %s143 = smul.addr %s142, 4
          %s144 = scalar_lea.vmem %s0, %s143
          %s145 = smul.u32 16, %s16
        $region24: #{tpu_custom_call.1} parent=19 // pred_fallthru
          _
      $region20: #{tpu_custom_call.1} parent=5 // pred_fallthru
        _
      %p146 = scmp.le.s32.totalorder 1, %s16
      %p147 = scmp.lt.s32.totalorder %s16, 3
      %p148 = pnand %p146, %p147
      %p149 = pneg %p148
      // Predicated region
      $region25: #{tpu_custom_call.1} parent=5 // pred_check
        _
      $region26: #{tpu_custom_call.1} parent=5 // pred_check_branch
        %151 = sbr.rel (%p148) target = $region28
      $region27: #{tpu_custom_call.1} parent=5 // pred_region
        %s152 = ssub.s32 %s16, 1
        %s153 = smul.u32 16, %s21
        %p154 = scmp.lt.s32.totalorder %s153, 31
        %s155 = scalar_select %p154, %s153, 31
        %s156 = smul.addr %s155, 4
        %s157 = scalar_lea.vmem %s0, %s156
        %p158 = pneg %p42
        %p159 = pneg %p39
        %p160 = pneg %p63
        %p161 = pneg %p60
        %p162 = pneg %p89
        %p163 = pneg %p86
        %s164 = sand.u32 %s76, 1
        %s165 = scalar_lea.sflag [#allocation3], %s164
        %s166 = sand.u32 %s76, 1
        %s167 = smul.addr %s166, 8
        %s168 = scalar_lea.vmem [#allocation2], %s167
        %p169 = pneg %p115
        %p170 = pneg %p112
        %s171 = sand.u32 %s102, 1
        %s172 = scalar_lea.sflag [#allocation5], %s171
        %s173 = sand.u32 %s102, 1
        %s174 = smul.addr %s173, 8
        %s175 = scalar_lea.vmem [#allocation4], %s174
        %s176 = smul.u32 16, %s21
        %p177 = scmp.lt.s32.totalorder %s176, 31
        %s178 = scalar_select %p177, %s176, 31
        %s179 = smul.addr %s178, 4
        %s180 = scalar_lea.vmem %s0, %s179
        %s181 = smul.u32 16, %s21
        %v183 = vld [vmem:[%s180] sm:$0xf]
        %v184 = vld [vmem:[%s180 + $0x4] sm:$0xf]
        %v185 = vld [vmem:[%s180 + $0x8] sm:$0xf]
        %v186 = vld [vmem:[%s180 + $0xc] sm:$0xf]
        %v187 = vld [vmem:[%s180 + $0x10] sm:$0xf]
        %v188 = vld [vmem:[%s180 + $0x14] sm:$0xf]
        %v189 = vld [vmem:[%s180 + $0x18] sm:$0xf]
        %v190 = vld [vmem:[%s180 + $0x1c] sm:$0xf]
        %v191 = vld [vmem:[%s180 + $0x20] sm:$0xf]
        %v192 = vld [vmem:[%s180 + $0x24] sm:$0xf]
        %v193 = vld [vmem:[%s180 + $0x28] sm:$0xf]
        %v194 = vld [vmem:[%s180 + $0x2c] sm:$0xf]
        %v195 = vld [vmem:[%s180 + $0x30] sm:$0xf]
        %v196 = vld [vmem:[%s180 + $0x34] sm:$0xf]
        %v197 = vld [vmem:[%s180 + $0x38] sm:$0xf]
        %v198 = vld [vmem:[%s180 + $0x3c] sm:$0xf]
        %v199 = vld [vmem:[%s1] sm:$0xf]
        %v200 = vld [vmem:[%s1 + $0x4] sm:$0xf]
        %v201 = vld [vmem:[%s1 + $0x8] sm:$0x1]
        %v218 = vunpack.c.l.b16 %v183
        %v219 = vunpack.c.l.b16 %v184
        %v220 = vunpack.c.l.b16 %v185
        %v221 = vunpack.c.l.b16 %v186
        %v222 = vunpack.c.l.b16 %v187
        %v223 = vunpack.c.l.b16 %v188
        %v224 = vunpack.c.l.b16 %v189
        %v225 = vunpack.c.l.b16 %v190
        %v226 = vunpack.c.l.b16 %v191
        %v227 = vunpack.c.l.b16 %v192
        %v228 = vunpack.c.l.b16 %v193
        %v229 = vunpack.c.l.b16 %v194
        %v230 = vunpack.c.l.b16 %v195
        %v231 = vunpack.c.l.b16 %v196
        %v232 = vunpack.c.l.b16 %v197
        %v233 = vunpack.c.l.b16 %v198
        %v234 = vpack.c.b16 %v219, %v218
        %v235 = vpack.c.b16 %v221, %v220
        %v236 = vpack.c.b16 %v223, %v222
        %v237 = vpack.c.b16 %v225, %v224
        %v238 = vpack.c.b16 %v227, %v226
        %v239 = vpack.c.b16 %v229, %v228
        %v240 = vpack.c.b16 %v231, %v230
        %v241 = vpack.c.b16 %v233, %v232
        %v245 = vunpack.c.l.b16 %v199
        %v246 = vunpack.c.l.b16 %v200
        %v247 = vunpack.c.l.b16 %v201
        %v248 = vpack.c.b16 %v246, %v245
        %v249 = vpack.c.b16 %v247, %v247
        %vm251 = vcmask 146432
        %v253 = vsel %vm251, %v234, 0
        %v256 = vsel %vm251, %v235, 0
        %v259 = vsel %vm251, %v236, 0
        %v262 = vsel %vm251, %v237, 0
        %v265 = vsel %vm251, %v238, 0
        %v268 = vsel %vm251, %v239, 0
        %v271 = vsel %vm251, %v240, 0
        %v274 = vsel %vm251, %v241, 0
        %vm276 = vcmask 1040384
        %v278 = vsel %vm276, %v249, 0
        %280 = vmatprep.subr.bf16.mxu0 0
        %281 = vmatpush1.bf16.msra.mxu0 %v248
        %282 = vmatprep.subr.bf16.mxu0 0
        %283 = vmatpush1.bf16.msra.mxu0 %v278
        %284 = vmatprep.subr.bf16.mxu0 0
        %285 = vmatpush1.bf16.msra.mxu0 0
        %286 = vmatprep.subr.bf16.mxu0 0
        %287 = vmatpush1.bf16.msra.mxu0 0
        %288 = vmatprep.subr.bf16.mxu0 0
        %289 = vmatpush1.bf16.msra.mxu0 0
        %290 = vmatprep.subr.bf16.mxu0 0
        %291 = vmatpush1.bf16.msra.mxu0 0
        %292 = vmatprep.subr.bf16.mxu0 0
        %293 = vmatpush1.bf16.msra.mxu0 0
        %294 = vmatprep.subr.bf16.mxu0 0
        %295 = vmatpush1.bf16.msra.mxu0 0
        %296 = vmatprep.subr.bf16.mxu0 0
        %297 = vmatpush1.bf16.msra.mxu0 0
        %298 = vmatprep.subr.bf16.mxu0 0
        %299 = vmatpush1.bf16.msra.mxu0 0
        %300 = vmatprep.subr.bf16.mxu0 0
        %301 = vmatpush1.bf16.msra.mxu0 0
        %302 = vmatprep.subr.bf16.mxu0 0
        %303 = vmatpush1.bf16.msra.mxu0 0
        %304 = vmatprep.subr.bf16.mxu0 0
        %305 = vmatpush1.bf16.msra.mxu0 0
        %306 = vmatprep.subr.bf16.mxu0 0
        %307 = vmatpush1.bf16.msra.mxu0 0
        %308 = vmatprep.subr.bf16.mxu0 0
        %309 = vmatpush1.bf16.msra.mxu0 0
        %310 = vmatprep.subr.bf16.mxu0 0
        %311 = vmatpush1.bf16.msra.mxu0 0
        %312 = vmatprep.mubr.bf16.mxu0 0
        %313 = vmatmul.mubr.bf16.gmra.mrb[0].mxu0 %v253
        %v314 = vpop.f32.mrb[0].mxu0
        %v315 = vadd.f32 0.0, %v314
        %v316 = vpop.f32.mrb[0].mxu0
        %v317 = vpop.f32.mrb[0].mxu0
        %v318 = vadd.f32 0.0, %v317
        %v319 = vpop.f32.mrb[0].mxu0
        %320 = vmatprep.mubr.bf16.mxu0 0
        %321 = vmatmul.mubr.bf16.gmra.mrb[0].mxu0 %v256
        %v322 = vpop.f32.mrb[0].mxu0
        %v323 = vadd.f32 0.0, %v322
        %v324 = vpop.f32.mrb[0].mxu0
        %v325 = vpop.f32.mrb[0].mxu0
        %v326 = vadd.f32 0.0, %v325
        %v327 = vpop.f32.mrb[0].mxu0
        %328 = vmatprep.mubr.bf16.mxu0 0
        %329 = vmatmul.mubr.bf16.gmra.mrb[0].mxu0 %v259
        %v330 = vpop.f32.mrb[0].mxu0
        %v331 = vadd.f32 0.0, %v330
        %v332 = vpop.f32.mrb[0].mxu0
        %v333 = vpop.f32.mrb[0].mxu0
        %v334 = vadd.f32 0.0, %v333
        %v335 = vpop.f32.mrb[0].mxu0
        %336 = vmatprep.mubr.bf16.mxu0 0
        %337 = vmatmul.mubr.bf16.gmra.mrb[0].mxu0 %v262
        %v338 = vpop.f32.mrb[0].mxu0
        %v339 = vadd.f32 0.0, %v338
        %v340 = vpop.f32.mrb[0].mxu0
        %v341 = vpop.f32.mrb[0].mxu0
        %v342 = vadd.f32 0.0, %v341
        %v343 = vpop.f32.mrb[0].mxu0
        %344 = vmatprep.mubr.bf16.mxu0 0
        %345 = vmatmul.mubr.bf16.gmra.mrb[0].mxu0 %v265
        %v346 = vpop.f32.mrb[0].mxu0
        %v347 = vadd.f32 0.0, %v346
        %v348 = vpop.f32.mrb[0].mxu0
        %v349 = vpop.f32.mrb[0].mxu0
        %v350 = vadd.f32 0.0, %v349
        %v351 = vpop.f32.mrb[0].mxu0
        %352 = vmatprep.mubr.bf16.mxu0 0
        %353 = vmatmul.mubr.bf16.gmra.mrb[0].mxu0 %v268
        %v354 = vpop.f32.mrb[0].mxu0
        %v355 = vadd.f32 0.0, %v354
        %v356 = vpop.f32.mrb[0].mxu0
        %v357 = vpop.f32.mrb[0].mxu0
        %v358 = vadd.f32 0.0, %v357
        %v359 = vpop.f32.mrb[0].mxu0
        %360 = vmatprep.mubr.bf16.mxu0 0
        %361 = vmatmul.mubr.bf16.gmra.mrb[0].mxu0 %v271
        %v362 = vpop.f32.mrb[0].mxu0
        %v363 = vadd.f32 0.0, %v362
        %v364 = vpop.f32.mrb[0].mxu0
        %v365 = vpop.f32.mrb[0].mxu0
        %v366 = vadd.f32 0.0, %v365
        %v367 = vpop.f32.mrb[0].mxu0
        %368 = vmatprep.mubr.bf16.mxu0 0
        %369 = vmatmul.mubr.bf16.gmra.mrb[0].mxu0 %v274
        %v370 = vpop.f32.mrb[0].mxu0
        %v371 = vadd.f32 0.0, %v370
        %v372 = vpop.f32.mrb[0].mxu0
        %v373 = vpop.f32.mrb[0].mxu0
        %v374 = vadd.f32 0.0, %v373
        %v375 = vpop.f32.mrb[0].mxu0
        %376 = vdwg.mxu0
        %vm377 = vcmask 261120
        %v378 = vsel %vm377, %v315, 0.0
        %v379 = vsel %vm377, %v318, 0.0
        %v380 = vadd.f32 %v378, %v379
        %v381 = vsel %vm377, %v323, 0.0
        %v382 = vadd.f32 %v380, %v381
        %v383 = vsel %vm377, %v326, 0.0
        %v384 = vadd.f32 %v382, %v383
        %v385 = vsel %vm377, %v331, 0.0
        %v386 = vadd.f32 %v384, %v385
        %v387 = vsel %vm377, %v334, 0.0
        %v388 = vadd.f32 %v386, %v387
        %v389 = vsel %vm377, %v339, 0.0
        %v390 = vadd.f32 %v388, %v389
        %v391 = vsel %vm377, %v342, 0.0
        %v392 = vadd.f32 %v390, %v391
        %v393 = vsel %vm377, %v347, 0.0
        %v394 = vadd.f32 %v392, %v393
        %v395 = vsel %vm377, %v350, 0.0
        %v396 = vadd.f32 %v394, %v395
        %v397 = vsel %vm377, %v355, 0.0
        %v398 = vadd.f32 %v396, %v397
        %v399 = vsel %vm377, %v358, 0.0
        %v400 = vadd.f32 %v398, %v399
        %v401 = vsel %vm377, %v363, 0.0
        %v402 = vadd.f32 %v400, %v401
        %v403 = vsel %vm377, %v366, 0.0
        %v404 = vadd.f32 %v402, %v403
        %v405 = vsel %vm377, %v371, 0.0
        %v406 = vadd.f32 %v404, %v405
        %v407 = vsel %vm377, %v374, 0.0
        %v408 = vadd.f32 %v406, %v407
        %409 = vst.msk [vmem:[%s168] sm:$0xff] %vm377, %v408
        %v410 = vmul.f32 %v315, %v315
        %v411 = vmul.f32 %v318, %v318
        %v412 = vmul.f32 %v323, %v323
        %v413 = vmul.f32 %v326, %v326
        %v414 = vmul.f32 %v331, %v331
        %v415 = vmul.f32 %v334, %v334
        %v416 = vmul.f32 %v339, %v339
        %v417 = vmul.f32 %v342, %v342
        %v418 = vmul.f32 %v347, %v347
        %v419 = vmul.f32 %v350, %v350
        %v420 = vmul.f32 %v355, %v355
        %v421 = vmul.f32 %v358, %v358
        %v422 = vmul.f32 %v363, %v363
        %v423 = vmul.f32 %v366, %v366
        %v424 = vmul.f32 %v371, %v371
        %v425 = vmul.f32 %v374, %v374
        %v426 = vsel %vm377, %v410, 0.0
        %v427 = vsel %vm377, %v411, 0.0
        %v428 = vadd.f32 %v426, %v427
        %v429 = vsel %vm377, %v412, 0.0
        %v430 = vadd.f32 %v428, %v429
        %v431 = vsel %vm377, %v413, 0.0
        %v432 = vadd.f32 %v430, %v431
        %v433 = vsel %vm377, %v414, 0.0
        %v434 = vadd.f32 %v432, %v433
        %v435 = vsel %vm377, %v415, 0.0
        %v436 = vadd.f32 %v434, %v435
        %v437 = vsel %vm377, %v416, 0.0
        %v438 = vadd.f32 %v436, %v437
        %v439 = vsel %vm377, %v417, 0.0
        %v440 = vadd.f32 %v438, %v439
        %v441 = vsel %vm377, %v418, 0.0
        %v442 = vadd.f32 %v440, %v441
        %v443 = vsel %vm377, %v419, 0.0
        %v444 = vadd.f32 %v442, %v443
        %v445 = vsel %vm377, %v420, 0.0
        %v446 = vadd.f32 %v444, %v445
        %v447 = vsel %vm377, %v421, 0.0
        %v448 = vadd.f32 %v446, %v447
        %v449 = vsel %vm377, %v422, 0.0
        %v450 = vadd.f32 %v448, %v449
        %v451 = vsel %vm377, %v423, 0.0
        %v452 = vadd.f32 %v450, %v451
        %v453 = vsel %vm377, %v424, 0.0
        %v454 = vadd.f32 %v452, %v453
        %v455 = vsel %vm377, %v425, 0.0
        %v456 = vadd.f32 %v454, %v455
        %457 = vst.msk [vmem:[%s175] sm:$0xff] %vm377, %v456
        %s458 = sand.u32 %s76, 1
        %s459 = scalar_lea.sflag [#allocation3], %s458
        %s460 = sand.u32 %s76, 1
        %s461 = smul.addr %s460, 8
        %s462 = scalar_lea.vmem [#allocation2], %s461
        %s463 = sand.u32 %s102, 1
        %s464 = scalar_lea.sflag [#allocation5], %s463
        %s465 = sand.u32 %s102, 1
        %s466 = smul.addr %s465, 8
        %s467 = scalar_lea.vmem [#allocation4], %s466
        // Predicated region
        $region29: #{tpu_custom_call.1} parent=27 // pred_check
          %p468 = pneg %p86
        $region30: #{tpu_custom_call.1} parent=27 // pred_check_branch
          %470 = sbr.rel (%p468) target = $region32
        $region31: #{tpu_custom_call.1} parent=27 // pred_region
          %s472 = ssub.s32 128, 128
          %473 = vsyncadd %s459, %s472
          %s474 = smul.addr %s21, 128
          %s475 = scalar_lea.hbm %s2, %s474
          %s477 = sshll.u32 %s462, 4
          %s478 = int_to_ptr.vmem [resolvable:$true] %s477
          %480 = dma.vmem_to_hbm [thread:$0]  %s478, 128, %s475, %s459
        $region32: #{tpu_custom_call.1} parent=27 // pred_fallthru
          _
        // Predicated region
        $region33: #{tpu_custom_call.1} parent=27 // pred_check
          %p481 = pneg %p112
        $region34: #{tpu_custom_call.1} parent=27 // pred_check_branch
          %483 = sbr.rel (%p481) target = $region36
        $region35: #{tpu_custom_call.1} parent=27 // pred_region
          %s485 = ssub.s32 128, 128
          %486 = vsyncadd %s464, %s485
          %s487 = smul.addr %s21, 128
          %s488 = scalar_lea.hbm %s3, %s487
          %s490 = sshll.u32 %s467, 4
          %s491 = int_to_ptr.vmem [resolvable:$true] %s490
          %493 = dma.vmem_to_hbm [thread:$0]  %s491, 128, %s488, %s464
        $region36: #{tpu_custom_call.1} parent=27 // pred_fallthru
          _
      $region28: #{tpu_custom_call.1} parent=5 // pred_fallthru
        _
      %p494 = scmp.le.s32.totalorder 2, %s16
      // Predicated region
      $region37: #{tpu_custom_call.1} parent=5 // pred_check
        %p495 = pneg %p494
      $region38: #{tpu_custom_call.1} parent=5 // pred_check_branch
        %497 = sbr.rel (%p495) target = $region40
      $region39: #{tpu_custom_call.1} parent=5 // pred_region
        %s498 = ssub.s32 %s16, 2
        // Predicated region
        $region41: #{tpu_custom_call.1} parent=39 // pred_check
          %p499 = pneg %p92
        $region42: #{tpu_custom_call.1} parent=39 // pred_check_branch
          %501 = sbr.rel (%p499) target = $region44
        $region43: #{tpu_custom_call.1} parent=39 // pred_region
          %s502 = sand.u32 %s77, 1
          %s503 = scalar_lea.sflag [#allocation3], %s502
          %s504 = sand.u32 %s77, 1
          %s505 = smul.addr %s504, 8
          %s506 = scalar_lea.vmem [#allocation2], %s505
          %507 = dma.done %s503, 128
        $region44: #{tpu_custom_call.1} parent=39 // pred_fallthru
          _
        // Predicated region
        $region45: #{tpu_custom_call.1} parent=39 // pred_check
          %p508 = pneg %p118
        $region46: #{tpu_custom_call.1} parent=39 // pred_check_branch
          %510 = sbr.rel (%p508) target = $region48
        $region47: #{tpu_custom_call.1} parent=39 // pred_region
          %s511 = sand.u32 %s103, 1
          %s512 = scalar_lea.sflag [#allocation5], %s511
          %s513 = sand.u32 %s103, 1
          %s514 = smul.addr %s513, 8
          %s515 = scalar_lea.vmem [#allocation4], %s514
          %516 = dma.done %s512, 128
        $region48: #{tpu_custom_call.1} parent=39 // pred_fallthru
          _
      $region40: #{tpu_custom_call.1} parent=5 // pred_fallthru
        _
    $region6: #{tpu_custom_call.1} parent=1 // loop_footer
      %s20 = sadd.s32 1, %s16
    $region7: #{tpu_custom_call.1} parent=1 // loop_footer_branch
      %15 = sbr.rel target = $region3
    $region8: #{tpu_custom_call.1} parent=1 // loop_exit
      _
    %517 = vsyncpa [#allocation3], 1
    %s518 = scalar_lea.sflag [#allocation3], 1
    %519 = vsyncpa %s518, 1
    %520 = vsyncpa [#allocation5], 1
    %s521 = scalar_lea.sflag [#allocation5], 1
    %522 = vsyncpa %s521, 1

</llo_original>
